<compile_context>
chip_gen: v5e
topology: v5e:2x2
jax: 0.10.0
libtpu: 0.0.40
codegen_flags: <defaults>
</compile_context>

<pallas_src>
import jax
import jax.numpy as jnp
from jax.experimental import pallas as pl
from jax.experimental.pallas import tpu as pltpu


# ----------------------------------------------------------------------------
# Kernel: per-(batch, row-tile) partial sums for the masked L1 loss.
# ----------------------------------------------------------------------------
def _l1_partials_kernel(pred_ref, targ_ref, mask_ref, num_ref, den_ref):
    p = pred_ref[...]                       # (1, TH, W) f32
    t = targ_ref[...]
    m = mask_ref[...]

    # diff[mask.bool()].abs(): only elements with a nonzero mask contribute.
    num = jnp.sum(jnp.where(m != 0.0, jnp.abs(t - p), 0.0))
    # M = sum(mask) uses the mask *values* (identical for 0/1 masks).
    den = jnp.sum(m)

    # Lane-dense writes; the wrapper reads element [0, 0] of each block.
    num_ref[...] = jnp.broadcast_to(num, num_ref.shape)
    den_ref[...] = jnp.broadcast_to(den, den_ref.shape)


def _pick_row_tile(H, W, elem_bytes=4, budget_bytes=12 * 1024 * 1024):
    """Largest row tile (a multiple of 8 that divides H, or H itself) such that
    the 3 double-buffered f32 input tiles fit comfortably in scoped VMEM."""
    per_row = 6 * W * elem_bytes            # 3 inputs x 2 pipeline buffers
    if H * per_row <= budget_bytes:
        return H                            # whole image per grid step
    max_rows = max(budget_bytes // per_row, 8)
    th = (max_rows // 8) * 8
    while th >= 8:
        if H % th == 0:
            return th
        th -= 8
    return H  # fallback: whole-image block (block dims == array dims is legal)


# ----------------------------------------------------------------------------
# Wrapper = L1Loss.forward (reduction='batch-based', the module default).
# ----------------------------------------------------------------------------
def l1_loss_pallas(prediction, target, mask, reduction="batch-based"):
    # TODO(synk): the 'image-based' reduction path is not implemented; its
    # fancy-indexing of the flattened masked residuals by batch indices has no
    # well-defined equivalent, so only the default 'batch-based' path exists.
    if reduction != "batch-based":
        raise NotImplementedError("only reduction='batch-based' is supported")

    prediction = prediction.astype(jnp.float32)
    target = target.astype(jnp.float32)
    mask = mask.astype(jnp.float32)

    B, H, W = prediction.shape
    TH = _pick_row_tile(H, W)
    n_t = H // TH

    img_spec = lambda: pl.BlockSpec((1, TH, W), lambda b, t: (b, t, 0))
    out_spec = lambda: pl.BlockSpec((1, 1, 8, 128), lambda b, t: (b, t, 0, 0))
    out_shape = jax.ShapeDtypeStruct((B, n_t, 8, 128), jnp.float32)

    num_parts, den_parts = pl.pallas_call(
        _l1_partials_kernel,
        out_shape=(out_shape, out_shape),
        grid=(B, n_t),
        in_specs=[img_spec(), img_spec(), img_spec()],
        out_specs=(out_spec(), out_spec()),
        compiler_params=pltpu.CompilerParams(
            dimension_semantics=("parallel", "parallel")),
    )(prediction, target, mask)

    num = jnp.sum(num_parts[:, :, 0, 0])
    den = 2.0 * jnp.sum(den_parts[:, :, 0, 0])
    return jnp.where(den == 0.0, jnp.float32(0.0), num / den)


# ----------------------------------------------------------------------------
# Pure-JAX reference (same math, no Pallas) for a correctness sanity check.
# ----------------------------------------------------------------------------
def _reference_l1(prediction, target, mask):
    p = prediction.astype(jnp.float32)
    t = target.astype(jnp.float32)
    m = mask.astype(jnp.float32)
    num = jnp.sum(jnp.where(m != 0.0, jnp.abs(t - p), 0.0))
    den = 2.0 * jnp.sum(m)
    return jnp.where(den == 0.0, jnp.float32(0.0), num / den)


if __name__ == "__main__":
    key = jax.random.PRNGKey(0)
    kp, kt, km = jax.random.split(key, 3)
    B, H, W = 2, 16, 16
    prediction = jax.random.normal(kp, (B, H, W), dtype=jnp.float32)
    target = jax.random.normal(kt, (B, H, W), dtype=jnp.float32)
    mask = (jax.random.uniform(km, (B, H, W)) > 0.3).astype(jnp.float32)

    loss_fn = jax.jit(l1_loss_pallas)
    out = jax.block_until_ready(loss_fn(prediction, target, mask))
    ref = jax.block_until_ready(_reference_l1(prediction, target, mask))

    assert bool(jnp.isfinite(out)), "loss is not finite"
    assert abs(float(out) - float(ref)) <= 1e-5 * max(1.0, abs(float(ref))), \
        f"mismatch: pallas={float(out)} ref={float(ref)}"
    print("KERNEL_OK")
</pallas_src>

<mosaic_0001>
module attributes {stable_mosaic.version = 11 : i64} {
  func.func @_l1_partials_kernel(%arg0: i32, %arg1: i32, %arg2: memref<1x16x16xf32, #tpu.memory_space<vmem>>, %arg3: memref<1x16x16xf32, #tpu.memory_space<vmem>>, %arg4: memref<1x16x16xf32, #tpu.memory_space<vmem>>, %arg5: memref<1x1x8x128xf32, #tpu.memory_space<vmem>>, %arg6: memref<1x1x8x128xf32, #tpu.memory_space<vmem>>) attributes {dimension_semantics = [#tpu.dimension_semantics<parallel>, #tpu.dimension_semantics<parallel>], iteration_bounds = array<i64: 2, 1>, scalar_prefetch = 0 : i64, scratch_operands = 0 : i64, tpu.core_type = #tpu.core_type<tc>, window_params = [{transform_indices = @transform_0, window_bounds = array<i64: 1, 16, 16>}, {transform_indices = @transform_1, window_bounds = array<i64: 1, 16, 16>}, {transform_indices = @transform_2, window_bounds = array<i64: 1, 16, 16>}, {transform_indices = @transform_3, window_bounds = array<i64: 1, 1, 8, 128>}, {transform_indices = @transform_4, window_bounds = array<i64: 1, 1, 8, 128>}]} {
    %c0 = arith.constant 0 : index
    %c0_0 = arith.constant 0 : index
    %c0_1 = arith.constant 0 : index
    %0 = vector.load %arg2[%c0, %c0_0, %c0_1] : memref<1x16x16xf32, #tpu.memory_space<vmem>>, vector<1x16x16xf32>
    %c0_2 = arith.constant 0 : index
    %c0_3 = arith.constant 0 : index
    %c0_4 = arith.constant 0 : index
    %1 = vector.load %arg3[%c0_2, %c0_3, %c0_4] : memref<1x16x16xf32, #tpu.memory_space<vmem>>, vector<1x16x16xf32>
    %c0_5 = arith.constant 0 : index
    %c0_6 = arith.constant 0 : index
    %c0_7 = arith.constant 0 : index
    %2 = vector.load %arg4[%c0_5, %c0_6, %c0_7] : memref<1x16x16xf32, #tpu.memory_space<vmem>>, vector<1x16x16xf32>
    %cst = arith.constant 0.000000e+00 : f32
    %3 = vector.broadcast %cst : f32 to vector<1x16x16xf32>
    %4 = arith.cmpf one, %2, %3 : vector<1x16x16xf32>
    %5 = arith.subf %1, %0 : vector<1x16x16xf32>
    %6 = math.absf %5 : vector<1x16x16xf32>
    %cst_8 = arith.constant 0.000000e+00 : f32
    %7 = vector.broadcast %cst_8 : f32 to vector<1x16x16xf32>
    %8 = arith.select %4, %6, %7 : vector<1x16x16xi1>, vector<1x16x16xf32>
    %9 = vector.shape_cast %8 : vector<1x16x16xf32> to vector<1x1x16x16xf32>
    %cst_9 = arith.constant dense<0.000000e+00> : vector<1xf32>
    %10 = vector.multi_reduction <add>, %9, %cst_9 [1, 2, 3] : vector<1x1x16x16xf32> to vector<1xf32>
    %11 = vector.shape_cast %10 : vector<1xf32> to vector<1x1x1x1xf32>
    %12 = vector.extract %11[0, 0, 0, 0] : f32 from vector<1x1x1x1xf32>
    %13 = vector.shape_cast %2 : vector<1x16x16xf32> to vector<1x1x16x16xf32>
    %cst_10 = arith.constant dense<0.000000e+00> : vector<1xf32>
    %14 = vector.multi_reduction <add>, %13, %cst_10 [1, 2, 3] : vector<1x1x16x16xf32> to vector<1xf32>
    %15 = vector.shape_cast %14 : vector<1xf32> to vector<1x1x1x1xf32>
    %16 = vector.extract %15[0, 0, 0, 0] : f32 from vector<1x1x1x1xf32>
    %17 = vector.broadcast %12 : f32 to vector<1x1x8x128xf32>
    %c0_11 = arith.constant 0 : index
    %c0_12 = arith.constant 0 : index
    %c0_13 = arith.constant 0 : index
    %c0_14 = arith.constant 0 : index
    %18 = vector.load %arg5[%c0_11, %c0_12, %c0_13, %c0_14] : memref<1x1x8x128xf32, #tpu.memory_space<vmem>>, vector<1x1x8x128xf32>
    tpu.vector_store %arg5[%c0_11, %c0_12, %c0_13, %c0_14], %17 {strides = array<i32>} : memref<1x1x8x128xf32, #tpu.memory_space<vmem>>, vector<1x1x8x128xf32>,
    %19 = vector.broadcast %16 : f32 to vector<1x1x8x128xf32>
    %c0_15 = arith.constant 0 : index
    %c0_16 = arith.constant 0 : index
    %c0_17 = arith.constant 0 : index
    %c0_18 = arith.constant 0 : index
    %20 = vector.load %arg6[%c0_15, %c0_16, %c0_17, %c0_18] : memref<1x1x8x128xf32, #tpu.memory_space<vmem>>, vector<1x1x8x128xf32>
    tpu.vector_store %arg6[%c0_15, %c0_16, %c0_17, %c0_18], %19 {strides = array<i32>} : memref<1x1x8x128xf32, #tpu.memory_space<vmem>>, vector<1x1x8x128xf32>,
    return
  }
  func.func @transform_0(%arg0: i32, %arg1: i32) -> (i32, i32, i32) {
    %c0_i32 = arith.constant 0 : i32
    %c0_i32_0 = arith.constant 0 : i32
    return %arg0, %arg1, %c0_i32 : i32, i32, i32
  }
  func.func @transform_1(%arg0: i32, %arg1: i32) -> (i32, i32, i32) {
    %c0_i32 = arith.constant 0 : i32
    %c0_i32_0 = arith.constant 0 : i32
    return %arg0, %arg1, %c0_i32 : i32, i32, i32
  }
  func.func @transform_2(%arg0: i32, %arg1: i32) -> (i32, i32, i32) {
    %c0_i32 = arith.constant 0 : i32
    %c0_i32_0 = arith.constant 0 : i32
    return %arg0, %arg1, %c0_i32 : i32, i32, i32
  }
  func.func @transform_3(%arg0: i32, %arg1: i32) -> (i32, i32, i32, i32) {
    %c0_i32 = arith.constant 0 : i32
    %c0_i32_0 = arith.constant 0 : i32
    %c0_i32_1 = arith.constant 0 : i32
    return %arg0, %arg1, %c0_i32, %c0_i32_0 : i32, i32, i32, i32
  }
  func.func @transform_4(%arg0: i32, %arg1: i32) -> (i32, i32, i32, i32) {
    %c0_i32 = arith.constant 0 : i32
    %c0_i32_0 = arith.constant 0 : i32
    %c0_i32_1 = arith.constant 0 : i32
    return %arg0, %arg1, %c0_i32, %c0_i32_0 : i32, i32, i32, i32
  }
}

</mosaic_0001>

<llo_original>
// kernel: l1_loss_pallas.1
$region0: #{l1_loss_pallas.1}
  #allocation0 [shape = 'u32[]', space=smem, size = 0x4, offset = 0x4, fixed_abs, tag = 'smem constant byte address 0x4 - core index']
  #allocation1 [shape = 'u32[72,128]{1,0:T(1,128)}', space=vmem, size = 0x9000, scoped, tag = 'internal scratch']
  %s0 = inlined_call_operand.hbm [shape: f32[2,16,16], index: 0, kind: input, shape index: {}]
  %s1 = inlined_call_operand.hbm [shape: f32[2,16,16], index: 1, kind: input, shape index: {}]
  %s2 = inlined_call_operand.hbm [shape: f32[2,16,16], index: 2, kind: input, shape index: {}]
  %s3 = inlined_call_operand.vmem [shape: f32[2,1,8,128], index: 3, kind: output, shape index: {0}]
  %s4 = inlined_call_operand.vmem [shape: f32[2,1,8,128], index: 4, kind: output, shape index: {1}]
  %5 = xla_tuple %s3, %s4
  %s6 = sld [smem:[#allocation0]]
  $region65: #{l1_loss_pallas.1} parent=0
    _
  %s8 = ssub.s32 1, %s6
  %s9 = scalar_select 0, %s8, %s6
  $region1: #{l1_loss_pallas.1} parent=0
    #allocation2 [shape = 'u8[16384]{0}', space=vmem, size = 0x4000, scoped, tag = 'input window, operand 0']
    #allocation3 [shape = 's32[2]{0}', space=sflag, size = 0x8, scoped, tag = 'scoped memory for l1_loss_pallas.1']
    #allocation4 [shape = 'u8[16384]{0}', space=vmem, size = 0x4000, scoped, tag = 'input window, operand 1']
    #allocation5 [shape = 's32[2]{0}', space=sflag, size = 0x8, scoped, tag = 'scoped memory for l1_loss_pallas.1']
    #allocation6 [shape = 'u8[16384]{0}', space=vmem, size = 0x4000, scoped, tag = 'input window, operand 2']
    %10 = vsyncpa [#allocation3], 0
    %s11 = scalar_lea.sflag [#allocation3], 1
    %12 = vsyncpa %s11, 0
    %13 = vsyncpa [#allocation5], 0
    %s14 = scalar_lea.sflag [#allocation5], 1
    %15 = vsyncpa %s14, 0
    loop: start=0, step=1, limit=4
    $region2: #{l1_loss_pallas.1} parent=1 // loop_pre_header
      _
    $region3: #{l1_loss_pallas.1} parent=1 // loop_header
      %s17 = sphi 0, %s21
      %p18 = scmp.ge.s32.totalorder %s17, 4
      %s24 = sphi 0, %s36
      %s25 = sphi 0, %s32
      %s26 = sphi 0, %s24
      %s27 = sphi 0, %s25
      %s28 = sphi 0, %s26
      %s29 = sphi 0, %s27
      %s41 = sphi 0, %s43
      %s44 = sphi 0, %s41
      %s45 = sphi 0, %s44
      %s61 = sphi 0, %s45
      %s69 = sphi 0, %s71
      %s72 = sphi 0, %s69
      %s73 = sphi 0, %s72
      %s89 = sphi 0, %s73
      %s97 = sphi 0, %s99
      %s100 = sphi 0, %s97
      %s101 = sphi 0, %s100
      %s117 = sphi 0, %s101
      %s125 = sphi 0, %s127
      %s128 = sphi 0, %s125
      %s129 = sphi 0, %s128
      %s145 = sphi 0, %s129
      %s153 = sphi 0, %s155
      %s156 = sphi 0, %s153
      %s157 = sphi 0, %s156
      %s173 = sphi 0, %s157
    $region4: #{l1_loss_pallas.1} parent=1 // loop_header_branch
      %20 = sbr.rel (%p18) target = $region8
    $region5: #{l1_loss_pallas.1} parent=1 // loop_body
      %s22 = ssub.s32 %s17, 1
      %s23 = ssub.s32 %s17, 2
      %s30 = sadd.s32 1, %s25
      %p31 = scmp.ge.s32.totalorder %s30, 1
      %s32 = scalar_select %p31, 0, %s30
      %s33 = sadd.s32 1, %s24
      %s34 = scalar_select %p31, %s33, %s24
      %p35 = scmp.ge.s32.totalorder %s34, 2
      %s36 = scalar_select %p35, 0, %s34
      %s37 = ssub.s32 %s24, %s36
      %s38 = ssub.s32 %s25, %s32
      %s39 = sor.u32 %s37, %s38
      %p40 = scmp.eq.s32.totalorder %s39, 0
      %s42 = sadd.s32 %s41, 1
      %s43 = scalar_select %p40, %s41, %s42
      %p46 = pneg %p40
      %p47 = scmp.eq.s32.totalorder %s17, 1
      %p48 = por %p46, %p47
      %p49 = scmp.ne.s32.totalorder %s41, %s44
      %p50 = scmp.eq.s32.totalorder %s17, 0
      %p51 = por %p49, %p50
      %p52 = scmp.ne.s32.totalorder %s41, %s44
      %p53 = scmp.eq.s32.totalorder %s22, 1
      %p54 = por %p52, %p53
      %p55 = scmp.ne.s32.totalorder %s44, %s45
      %p56 = scmp.eq.s32.totalorder %s22, 0
      %p57 = por %p55, %p56
      %p58 = scmp.ne.s32.totalorder %s44, %s45
      %p59 = scmp.eq.s32.totalorder %s23, 1
      %p60 = por %p58, %p59
      %p62 = scmp.ne.s32.totalorder %s45, %s61
      %p63 = scmp.eq.s32.totalorder %s23, 0
      %p64 = por %p62, %p63
      %s65 = ssub.s32 %s24, %s36
      %s66 = ssub.s32 %s25, %s32
      %s67 = sor.u32 %s65, %s66
      %p68 = scmp.eq.s32.totalorder %s67, 0
      %s70 = sadd.s32 %s69, 1
      %s71 = scalar_select %p68, %s69, %s70
      %p74 = pneg %p68
      %p75 = scmp.eq.s32.totalorder %s17, 1
      %p76 = por %p74, %p75
      %p77 = scmp.ne.s32.totalorder %s69, %s72
      %p78 = scmp.eq.s32.totalorder %s17, 0
      %p79 = por %p77, %p78
      %p80 = scmp.ne.s32.totalorder %s69, %s72
      %p81 = scmp.eq.s32.totalorder %s22, 1
      %p82 = por %p80, %p81
      %p83 = scmp.ne.s32.totalorder %s72, %s73
      %p84 = scmp.eq.s32.totalorder %s22, 0
      %p85 = por %p83, %p84
      %p86 = scmp.ne.s32.totalorder %s72, %s73
      %p87 = scmp.eq.s32.totalorder %s23, 1
      %p88 = por %p86, %p87
      %p90 = scmp.ne.s32.totalorder %s73, %s89
      %p91 = scmp.eq.s32.totalorder %s23, 0
      %p92 = por %p90, %p91
      %s93 = ssub.s32 %s24, %s36
      %s94 = ssub.s32 %s25, %s32
      %s95 = sor.u32 %s93, %s94
      %p96 = scmp.eq.s32.totalorder %s95, 0
      %s98 = sadd.s32 %s97, 1
      %s99 = scalar_select %p96, %s97, %s98
      %p102 = pneg %p96
      %p103 = scmp.eq.s32.totalorder %s17, 1
      %p104 = por %p102, %p103
      %p105 = scmp.ne.s32.totalorder %s97, %s100
      %p106 = scmp.eq.s32.totalorder %s17, 0
      %p107 = por %p105, %p106
      %p108 = scmp.ne.s32.totalorder %s97, %s100
      %p109 = scmp.eq.s32.totalorder %s22, 1
      %p110 = por %p108, %p109
      %p111 = scmp.ne.s32.totalorder %s100, %s101
      %p112 = scmp.eq.s32.totalorder %s22, 0
      %p113 = por %p111, %p112
      %p114 = scmp.ne.s32.totalorder %s100, %s101
      %p115 = scmp.eq.s32.totalorder %s23, 1
      %p116 = por %p114, %p115
      %p118 = scmp.ne.s32.totalorder %s101, %s117
      %p119 = scmp.eq.s32.totalorder %s23, 0
      %p120 = por %p118, %p119
      %s121 = ssub.s32 %s24, %s36
      %s122 = ssub.s32 %s25, %s32
      %s123 = sor.u32 %s121, %s122
      %p124 = scmp.eq.s32.totalorder %s123, 0
      %s126 = sadd.s32 %s125, 1
      %s127 = scalar_select %p124, %s125, %s126
      %p130 = pneg %p124
      %p131 = scmp.eq.s32.totalorder %s17, 1
      %p132 = por %p130, %p131
      %p133 = scmp.ne.s32.totalorder %s125, %s128
      %p134 = scmp.eq.s32.totalorder %s17, 0
      %p135 = por %p133, %p134
      %p136 = scmp.ne.s32.totalorder %s125, %s128
      %p137 = scmp.eq.s32.totalorder %s22, 1
      %p138 = por %p136, %p137
      %p139 = scmp.ne.s32.totalorder %s128, %s129
      %p140 = scmp.eq.s32.totalorder %s22, 0
      %p141 = por %p139, %p140
      %p142 = scmp.ne.s32.totalorder %s128, %s129
      %p143 = scmp.eq.s32.totalorder %s23, 1
      %p144 = por %p142, %p143
      %p146 = scmp.ne.s32.totalorder %s129, %s145
      %p147 = scmp.eq.s32.totalorder %s23, 0
      %p148 = por %p146, %p147
      %s149 = ssub.s32 %s24, %s36
      %s150 = ssub.s32 %s25, %s32
      %s151 = sor.u32 %s149, %s150
      %p152 = scmp.eq.s32.totalorder %s151, 0
      %s154 = sadd.s32 %s153, 1
      %s155 = scalar_select %p152, %s153, %s154
      %p158 = pneg %p152
      %p159 = scmp.eq.s32.totalorder %s17, 1
      %p160 = por %p158, %p159
      %p161 = scmp.ne.s32.totalorder %s153, %s156
      %p162 = scmp.eq.s32.totalorder %s17, 0
      %p163 = por %p161, %p162
      %p164 = scmp.ne.s32.totalorder %s153, %s156
      %p165 = scmp.eq.s32.totalorder %s22, 1
      %p166 = por %p164, %p165
      %p167 = scmp.ne.s32.totalorder %s156, %s157
      %p168 = scmp.eq.s32.totalorder %s22, 0
      %p169 = por %p167, %p168
      %p170 = scmp.ne.s32.totalorder %s156, %s157
      %p171 = scmp.eq.s32.totalorder %s23, 1
      %p172 = por %p170, %p171
      %p174 = scmp.ne.s32.totalorder %s157, %s173
      %p175 = scmp.eq.s32.totalorder %s23, 0
      %p176 = por %p174, %p175
      %p177 = scmp.le.s32.totalorder 1, %s17
      %p178 = scmp.lt.s32.totalorder %s17, 3
      %p179 = pnand %p177, %p178
      %p180 = pneg %p179
      // Predicated region
      $region9: #{l1_loss_pallas.1} parent=5 // pred_check
        _
      $region10: #{l1_loss_pallas.1} parent=5 // pred_check_branch
        %182 = sbr.rel (%p179) target = $region12
      $region11: #{l1_loss_pallas.1} parent=5 // pred_region
        %s183 = ssub.s32 %s17, 1
      $region12: #{l1_loss_pallas.1} parent=5 // pred_fallthru
        _
      %p184 = scmp.lt.s32.totalorder %s17, 2
      // Predicated region
      $region13: #{l1_loss_pallas.1} parent=5 // pred_check
        %p185 = pneg %p184
      $region14: #{l1_loss_pallas.1} parent=5 // pred_check_branch
        %187 = sbr.rel (%p185) target = $region16
      $region15: #{l1_loss_pallas.1} parent=5 // pred_region
        // Predicated region
        $region17: #{l1_loss_pallas.1} parent=15 // pred_check
          %p188 = pneg %p51
        $region18: #{l1_loss_pallas.1} parent=15 // pred_check_branch
          %190 = sbr.rel (%p188) target = $region20
        $region19: #{l1_loss_pallas.1} parent=15 // pred_region
          %s191 = sand.u32 %s41, 1
          %s192 = scalar_lea.sflag [#allocation3], %s191
          %s193 = sand.u32 %s41, 1
          %s194 = smul.addr %s193, 16
          %s195 = scalar_lea.vmem [#allocation2], %s194
          %s196 = smul.u32 2, %s25
          %198 = vsyncadd %s192, 0
          %s199 = smul.addr %s24, 2
          %s200 = sadd.s32 %s196, %s199
          %s201 = smul.addr %s200, 8
          %s202 = scalar_lea.hbm %s0, %s201
          %s203 = sshll.u32 %s202, 4
          %s204 = int_to_ptr.hbm [resolvable:$true] %s203
          %s205 = sshll.u32 %s195, 4
          %s206 = int_to_ptr.vmem [resolvable:$true] %s205
          %211 = dma.hbm_to_vmem [thread:$0]  %s204, 256, %s206, %s192, 128, 128, 8
        $region20: #{l1_loss_pallas.1} parent=15 // pred_fallthru
          _
        // Predicated region
        $region21: #{l1_loss_pallas.1} parent=15 // pred_check
          %p212 = pneg %p79
        $region22: #{l1_loss_pallas.1} parent=15 // pred_check_branch
          %214 = sbr.rel (%p212) target = $region24
        $region23: #{l1_loss_pallas.1} parent=15 // pred_region
          %s215 = sand.u32 %s17, 1
          %s216 = scalar_lea.sflag [#allocation5], %s215
          %s217 = sand.u32 %s69, 1
          %s218 = smul.addr %s217, 16
          %s219 = scalar_lea.vmem [#allocation4], %s218
          %s220 = smul.u32 2, %s25
          %222 = vsyncadd %s216, 0
          %s223 = smul.addr %s24, 2
          %s224 = sadd.s32 %s220, %s223
          %s225 = smul.addr %s224, 8
          %s226 = scalar_lea.hbm %s1, %s225
          %s227 = sshll.u32 %s226, 4
          %s228 = int_to_ptr.hbm [resolvable:$true] %s227
          %s229 = sshll.u32 %s219, 4
          %s230 = int_to_ptr.vmem [resolvable:$true] %s229
          %235 = dma.hbm_to_vmem [thread:$0]  %s228, 256, %s230, %s216, 128, 128, 8
        $region24: #{l1_loss_pallas.1} parent=15 // pred_fallthru
          _
        // Predicated region
        $region25: #{l1_loss_pallas.1} parent=15 // pred_check
          %p236 = pneg %p107
        $region26: #{l1_loss_pallas.1} parent=15 // pred_check_branch
          %238 = sbr.rel (%p236) target = $region28
        $region27: #{l1_loss_pallas.1} parent=15 // pred_region
          %s239 = sand.u32 %s17, 1
          %s240 = scalar_lea.sflag [#allocation5], %s239
          %s241 = sand.u32 %s97, 1
          %s242 = smul.addr %s241, 16
          %s243 = scalar_lea.vmem [#allocation6], %s242
          %s244 = smul.u32 2, %s25
          %246 = vsyncadd %s240, 0
          %s247 = smul.addr %s24, 2
          %s248 = sadd.s32 %s244, %s247
          %s249 = smul.addr %s248, 8
          %s250 = scalar_lea.hbm %s2, %s249
          %s251 = sshll.u32 %s250, 4
          %s252 = int_to_ptr.hbm [resolvable:$true] %s251
          %s253 = sshll.u32 %s243, 4
          %s254 = int_to_ptr.vmem [resolvable:$true] %s253
          %259 = dma.hbm_to_vmem [thread:$0]  %s252, 256, %s254, %s240, 128, 128, 8
        $region28: #{l1_loss_pallas.1} parent=15 // pred_fallthru
          _
      $region16: #{l1_loss_pallas.1} parent=5 // pred_fallthru
        _
      %p260 = scmp.le.s32.totalorder 1, %s17
      %p261 = scmp.lt.s32.totalorder %s17, 3
      %p262 = pnand %p260, %p261
      %p263 = pneg %p262
      // Predicated region
      $region29: #{l1_loss_pallas.1} parent=5 // pred_check
        _
      $region30: #{l1_loss_pallas.1} parent=5 // pred_check_branch
        %265 = sbr.rel (%p262) target = $region32
      $region31: #{l1_loss_pallas.1} parent=5 // pred_region
        %s266 = ssub.s32 %s17, 1
        %s267 = sand.u32 %s44, 1
        %s268 = scalar_lea.sflag [#allocation3], %s267
        %s269 = sand.u32 %s44, 1
        %s270 = smul.addr %s269, 16
        %s271 = scalar_lea.vmem [#allocation2], %s270
        // Predicated region
        $region33: #{l1_loss_pallas.1} parent=31 // pred_check
          %p272 = pneg %p57
        $region34: #{l1_loss_pallas.1} parent=31 // pred_check_branch
          %274 = sbr.rel (%p272) target = $region36
        $region35: #{l1_loss_pallas.1} parent=31 // pred_region
          %276 = dma.done %s268, 256
        $region36: #{l1_loss_pallas.1} parent=31 // pred_fallthru
          _
        %s277 = sand.u32 %s22, 1
        %s278 = scalar_lea.sflag [#allocation5], %s277
        %s279 = sand.u32 %s72, 1
        %s280 = smul.addr %s279, 16
        %s281 = scalar_lea.vmem [#allocation4], %s280
        // Predicated region
        $region37: #{l1_loss_pallas.1} parent=31 // pred_check
          %p282 = pneg %p85
        $region38: #{l1_loss_pallas.1} parent=31 // pred_check_branch
          %284 = sbr.rel (%p282) target = $region40
        $region39: #{l1_loss_pallas.1} parent=31 // pred_region
          %286 = dma.done %s278, 256
        $region40: #{l1_loss_pallas.1} parent=31 // pred_fallthru
          _
        %s287 = sand.u32 %s22, 1
        %s288 = scalar_lea.sflag [#allocation5], %s287
        %s289 = sand.u32 %s100, 1
        %s290 = smul.addr %s289, 16
        %s291 = scalar_lea.vmem [#allocation6], %s290
        // Predicated region
        $region41: #{l1_loss_pallas.1} parent=31 // pred_check
          %p292 = pneg %p113
        $region42: #{l1_loss_pallas.1} parent=31 // pred_check_branch
          %294 = sbr.rel (%p292) target = $region44
        $region43: #{l1_loss_pallas.1} parent=31 // pred_region
          %296 = dma.done %s288, 256
        $region44: #{l1_loss_pallas.1} parent=31 // pred_fallthru
          _
        %s297 = sand.u32 %s44, 1
        %s298 = scalar_lea.sflag [#allocation3], %s297
        %s299 = sand.u32 %s44, 1
        %s300 = smul.addr %s299, 16
        %s301 = scalar_lea.vmem [#allocation2], %s300
        %p302 = pneg %p57
        %p303 = pneg %p54
        %s304 = sand.u32 %s22, 1
        %s305 = scalar_lea.sflag [#allocation5], %s304
        %s306 = sand.u32 %s72, 1
        %s307 = smul.addr %s306, 16
        %s308 = scalar_lea.vmem [#allocation4], %s307
        %p309 = pneg %p85
        %p310 = pneg %p82
        %s311 = sand.u32 %s22, 1
        %s312 = scalar_lea.sflag [#allocation5], %s311
        %s313 = sand.u32 %s100, 1
        %s314 = smul.addr %s313, 16
        %s315 = scalar_lea.vmem [#allocation6], %s314
        %p316 = pneg %p113
        %p317 = pneg %p110
        %p318 = pneg %p141
        %p319 = pneg %p138
        %p320 = scmp.lt.s32.totalorder %s26, 1
        %s321 = scalar_select %p320, %s26, 1
        %p322 = scmp.lt.s32.totalorder %s27, 0
        %s323 = scalar_select %p322, %s27, 0
        %s324 = sadd.s32 %s323, %s321
        %s325 = smul.addr %s324, 8
        %s326 = scalar_lea.vmem %s3, %s325
        %p327 = pneg %p169
        %p328 = pneg %p166
        %p329 = scmp.lt.s32.totalorder %s26, 1
        %s330 = scalar_select %p329, %s26, 1
        %p331 = scmp.lt.s32.totalorder %s27, 0
        %s332 = scalar_select %p331, %s27, 0
        %s333 = sadd.s32 %s332, %s330
        %s334 = smul.addr %s333, 8
        %s335 = scalar_lea.vmem %s4, %s334
        %s336 = smul.u32 2, %s27
        %s337 = smul.u32 2, %s27
        %s338 = smul.u32 2, %s27
        %p339 = scmp.lt.s32.totalorder %s26, 1
        %s340 = scalar_select %p339, %s26, 1
        %p341 = scmp.lt.s32.totalorder %s27, 0
        %s342 = scalar_select %p341, %s27, 0
        %s343 = sadd.s32 %s342, %s340
        %s344 = smul.addr %s343, 8
        %s345 = scalar_lea.vmem %s3, %s344
        %p346 = scmp.lt.s32.totalorder %s26, 1
        %s347 = scalar_select %p346, %s26, 1
        %p348 = scmp.lt.s32.totalorder %s27, 0
        %s349 = scalar_select %p348, %s27, 0
        %s350 = sadd.s32 %s349, %s347
        %s351 = smul.addr %s350, 8
        %s352 = scalar_lea.vmem %s4, %s351
        %v353 = vld [vmem:[%s271] sm:$0xff]
        %v354 = vld [vmem:[%s271 + $0x8] sm:$0xff]
        %v355 = vld [vmem:[%s281] sm:$0xff]
        %v356 = vld [vmem:[%s281 + $0x8] sm:$0xff]
        %v357 = vld [vmem:[%s291] sm:$0xff]
        %v358 = vld [vmem:[%s291 + $0x8] sm:$0xff]
        %vm359 = vcmp.ne.f32.partialorder %v357, 0.0
        %vm360 = vcmp.ne.f32.partialorder %v358, 0.0
        %v361 = vsub.f32 %v355, %v353
        %v362 = vsub.f32 %v356, %v354
        %v363 = vand.u32 2147483647, %v361
        %v364 = vand.u32 2147483647, %v362
        %v365 = vsel %vm359, %v363, 0.0
        %v366 = vsel %vm360, %v364, 0.0
        %vm367 = vcmask 130048
        %v368 = vsel %vm367, %v365, 0.0
        %v369 = vsel %vm367, %v366, 0.0
        %v370 = vadd.f32 %v368, %v369
        %371 = vadd.xlane.f32.xlu0 %v370
        %v372 = vpop.xlane.xlu0 %371
        %v373 = vrot.slane %v372, 4
        %v374 = vadd.f32 %v372, %v373
        %v375 = vrot.slane %v374, 2
        %v376 = vadd.f32 %v374, %v375
        %v377 = vrot.slane %v376, 1
        %v378 = vadd.f32 %v376, %v377
        %s379 = vtos %v378
        %v380 = vsel %vm367, %v357, 0.0
        %v381 = vsel %vm367, %v358, 0.0
        %v382 = vadd.f32 %v380, %v381
        %383 = vadd.xlane.f32.xlu0 %v382
        %v384 = vpop.xlane.xlu0 %383
        %v385 = vrot.slane %v384, 4
        %v386 = vadd.f32 %v384, %v385
        %v387 = vrot.slane %v386, 2
        %v388 = vadd.f32 %v386, %v387
        %v389 = vrot.slane %v388, 1
        %v390 = vadd.f32 %v388, %v389
        %s391 = vtos %v390
        %v392 = vstv %s379
        %393 = vst [vmem:[%s345] sm:$0xff] %v392
        %v394 = vstv %s391
        %395 = vst [vmem:[%s352] sm:$0xff] %v394
        %p396 = scmp.lt.s32.totalorder %s26, 1
        %s397 = scalar_select %p396, %s26, 1
        %p398 = scmp.lt.s32.totalorder %s27, 0
        %s399 = scalar_select %p398, %s27, 0
        %s400 = sadd.s32 %s399, %s397
        %s401 = smul.addr %s400, 8
        %s402 = scalar_lea.vmem %s3, %s401
        %p403 = scmp.lt.s32.totalorder %s26, 1
        %s404 = scalar_select %p403, %s26, 1
        %p405 = scmp.lt.s32.totalorder %s27, 0
        %s406 = scalar_select %p405, %s27, 0
        %s407 = sadd.s32 %s406, %s404
        %s408 = smul.addr %s407, 8
        %s409 = scalar_lea.vmem %s4, %s408
        // Predicated region
        $region45: #{l1_loss_pallas.1} parent=31 // pred_check
          %p410 = pneg %p138
        $region46: #{l1_loss_pallas.1} parent=31 // pred_check_branch
          %412 = sbr.rel (%p410) target = $region48
        $region47: #{l1_loss_pallas.1} parent=31 // pred_region
          _
        $region48: #{l1_loss_pallas.1} parent=31 // pred_fallthru
          _
        // Predicated region
        $region49: #{l1_loss_pallas.1} parent=31 // pred_check
          %p413 = pneg %p166
        $region50: #{l1_loss_pallas.1} parent=31 // pred_check_branch
          %415 = sbr.rel (%p413) target = $region52
        $region51: #{l1_loss_pallas.1} parent=31 // pred_region
          _
        $region52: #{l1_loss_pallas.1} parent=31 // pred_fallthru
          _
      $region32: #{l1_loss_pallas.1} parent=5 // pred_fallthru
        _
      %p416 = scmp.le.s32.totalorder 2, %s17
      // Predicated region
      $region53: #{l1_loss_pallas.1} parent=5 // pred_check
        %p417 = pneg %p416
      $region54: #{l1_loss_pallas.1} parent=5 // pred_check_branch
        %419 = sbr.rel (%p417) target = $region56
      $region55: #{l1_loss_pallas.1} parent=5 // pred_region
        %s420 = ssub.s32 %s17, 2
        // Predicated region
        $region57: #{l1_loss_pallas.1} parent=55 // pred_check
          %p421 = pneg %p144
        $region58: #{l1_loss_pallas.1} parent=55 // pred_check_branch
          %423 = sbr.rel (%p421) target = $region60
        $region59: #{l1_loss_pallas.1} parent=55 // pred_region
          %p424 = scmp.lt.s32.totalorder %s28, 1
          %s425 = scalar_select %p424, %s28, 1
          %p426 = scmp.lt.s32.totalorder %s29, 0
          %s427 = scalar_select %p426, %s29, 0
          %s428 = sadd.s32 %s427, %s425
          %s429 = smul.addr %s428, 8
          %s430 = scalar_lea.vmem %s3, %s429
        $region60: #{l1_loss_pallas.1} parent=55 // pred_fallthru
          _
        // Predicated region
        $region61: #{l1_loss_pallas.1} parent=55 // pred_check
          %p431 = pneg %p172
        $region62: #{l1_loss_pallas.1} parent=55 // pred_check_branch
          %433 = sbr.rel (%p431) target = $region64
        $region63: #{l1_loss_pallas.1} parent=55 // pred_region
          %p434 = scmp.lt.s32.totalorder %s28, 1
          %s435 = scalar_select %p434, %s28, 1
          %p436 = scmp.lt.s32.totalorder %s29, 0
          %s437 = scalar_select %p436, %s29, 0
          %s438 = sadd.s32 %s437, %s435
          %s439 = smul.addr %s438, 8
          %s440 = scalar_lea.vmem %s4, %s439
        $region64: #{l1_loss_pallas.1} parent=55 // pred_fallthru
          _
      $region56: #{l1_loss_pallas.1} parent=5 // pred_fallthru
        _
    $region6: #{l1_loss_pallas.1} parent=1 // loop_footer
      %s21 = sadd.s32 1, %s17
    $region7: #{l1_loss_pallas.1} parent=1 // loop_footer_branch
      %16 = sbr.rel target = $region3
    $region8: #{l1_loss_pallas.1} parent=1 // loop_exit
      _
    %441 = vsyncpa [#allocation3], 1
    %s442 = scalar_lea.sflag [#allocation3], 1
    %443 = vsyncpa %s442, 1
    %444 = vsyncpa [#allocation5], 1
    %s445 = scalar_lea.sflag [#allocation5], 1
    %446 = vsyncpa %s445, 1

</llo_original>
